<compile_context>
chip_gen: v6e
topology: v6e:2x2x1
jax: 0.10.0
libtpu: 0.0.40
codegen_flags: <defaults>
</compile_context>

<pallas_src>
import jax
import jax.numpy as jnp
from jax.experimental import pallas as pl
from jax.experimental.pallas import tpu as pltpu


def _hardsigmoid_kernel(x_ref, o_ref):
    # relu6(x + 3) / 6 == clamp(x + 3, 0, 6) * (1/6)  -- VALU only, no divide.
    x = x_ref[...]
    three = jnp.asarray(3.0, dtype=x.dtype)
    six = jnp.asarray(6.0, dtype=x.dtype)
    inv6 = jnp.asarray(1.0 / 6.0, dtype=x.dtype)
    o_ref[...] = jnp.clip(x + three, 0, six) * inv6


def _round_up(a, b):
    return -(-a // b) * b


_TILE_BYTE_BUDGET = 4 << 20  # ~4 MiB per block (review: target 2-4 MiB)


def _choose_tiles(M, N, itemsize):
    """Pick (bm, bn) aligned to (8, 128) with bm*bn*itemsize <= budget."""
    n_pad = _round_up(N, 128)
    m_pad = _round_up(M, 8)
    max_elems = _TILE_BYTE_BUDGET // itemsize
    if n_pad <= max_elems // 8:
        # Full lane width: tile only over rows.
        bn = n_pad
        bm = min(m_pad, max(8, (max_elems // bn) // 8 * 8))
        # Keep >=2 row blocks for non-tiny inputs (v7x has 2 TensorCores).
        if m_pad >= 16 and m_pad * n_pad * itemsize > (1 << 20) and bm >= m_pad:
            bm = max(8, _round_up(-(-m_pad // 2), 8))
    else:
        # Lane dim alone exceeds the budget: split lanes, keep 8 rows.
        bm = 8
        bn = min(n_pad, max(128, (max_elems // 8) // 128 * 128))
    return bm, bn


def hardsigmoid_pallas(x):
    """Elementwise hardsigmoid via a tiled Pallas kernel (any shape/dtype)."""
    if x.size == 0:
        return x  # nothing to compute for empty inputs

    orig_shape = x.shape
    if x.ndim == 1:
        # Lane-dense 2-D slab for 1-D inputs when evenly divisible by 128.
        if x.shape[0] >= 128 and x.shape[0] % 128 == 0:
            x2 = x.reshape(-1, 128)
        else:
            x2 = x.reshape(1, -1)
    elif x.ndim >= 2:
        x2 = x.reshape(-1, x.shape[-1])
    else:  # 0-d
        x2 = x.reshape(1, 1)
    M, N = x2.shape
    itemsize = x2.dtype.itemsize

    # Tiny inputs (e.g. the module's (1,4)): single full-array block — the
    # (8,128) divisibility rule does not apply when the block spans the array.
    if M * N * itemsize <= 8 * 128 * 4:
        out2 = pl.pallas_call(
            _hardsigmoid_kernel,
            out_shape=jax.ShapeDtypeStruct((M, N), x2.dtype),
        )(x2)
        return out2.reshape(orig_shape)

    bm, bn = _choose_tiles(M, N, itemsize)
    M_pad = _round_up(M, bm)
    N_pad = _round_up(N, bn)
    xp = x2 if (M_pad, N_pad) == (M, N) else jnp.pad(
        x2, ((0, M_pad - M), (0, N_pad - N)))
    grid = (M_pad // bm, N_pad // bn)

    tile_bytes = bm * bn * itemsize
    # 2 pipeline buffers x (in + out) x tile + headroom; well under every
    # generation's ceiling (v5e scoped default 16 MiB, v7x physical 64 MiB).
    vmem_limit = int(2 * 2 * tile_bytes) + (4 << 20)

    out2 = pl.pallas_call(
        _hardsigmoid_kernel,
        out_shape=jax.ShapeDtypeStruct((M_pad, N_pad), x2.dtype),
        grid=grid,
        in_specs=[pl.BlockSpec((bm, bn), lambda i, j: (i, j))],
        out_specs=pl.BlockSpec((bm, bn), lambda i, j: (i, j)),
        compiler_params=pltpu.CompilerParams(
            dimension_semantics=("parallel", "parallel"),
            vmem_limit_bytes=vmem_limit),
    )(xp)
    if (M_pad, N_pad) != (M, N):
        out2 = out2[:M, :N]
    return out2.reshape(orig_shape)


def model_forward(x0):
    """Pallas implementation of Model.forward: relu6(x0 + 3) / 6."""
    return hardsigmoid_pallas(x0)


def init_params(key):
    # nn.Linear(4, 4) exists in the module's __init__ but is never used in
    # forward(); initialized only for parity with the reference module.
    kw, kb = jax.random.split(key)
    bound = 1.0 / jnp.sqrt(4.0)
    w = jax.random.uniform(kw, (4, 4), jnp.float32, -bound, bound)
    b = jax.random.uniform(kb, (4,), jnp.float32, -bound, bound)
    return {"linear_w": w, "linear_b": b}


def _ref(x):
    return (jnp.clip(x.astype(jnp.float32) + 3.0, 0.0, 6.0) / 6.0).astype(x.dtype)


if __name__ == "__main__":
    key = jax.random.PRNGKey(0)
    kx, kp, kbig, kodd, kbf = jax.random.split(key, 5)

    # 1) Module-faithful input: x0 = torch.randn(1, 4) -> single (1,4) block.
    x0 = jax.random.normal(kx, (1, 4), dtype=jnp.float32)
    _params = init_params(kp)  # unused by forward (matches PyTorch module)
    out = jax.block_until_ready(model_forward(x0))
    assert out.shape == (1, 4)
    assert jnp.allclose(out, _ref(x0), atol=1e-6)

    # 2) Aligned tiled path: full-lane-width blocks, >=2 row blocks.
    x_big = jax.random.normal(kbig, (1024, 512), dtype=jnp.float32)
    out_big = jax.block_until_ready(hardsigmoid_pallas(x_big))
    assert jnp.allclose(out_big, _ref(x_big), atol=1e-6)

    # 3) Unaligned dims -> pad / slice path (no full-dim fallback anymore).
    x_odd = jax.random.normal(kodd, (100, 300), dtype=jnp.float32)
    out_odd = jax.block_until_ready(hardsigmoid_pallas(x_odd))
    assert out_odd.shape == (100, 300)
    assert jnp.allclose(out_odd, _ref(x_odd), atol=1e-6)

    # 4) bf16 path: native bf16 compute, dtype preserved.
    x_bf = jax.random.normal(kbf, (256, 256), dtype=jnp.bfloat16)
    out_bf = jax.block_until_ready(hardsigmoid_pallas(x_bf))
    assert out_bf.dtype == jnp.bfloat16
    assert jnp.allclose(out_bf.astype(jnp.float32),
                        _ref(x_bf).astype(jnp.float32), atol=1e-2)

    # 5) Empty input handled without error.
    x_empty = jnp.zeros((0, 4), dtype=jnp.float32)
    out_empty = hardsigmoid_pallas(x_empty)
    assert out_empty.shape == (0, 4)

    print("KERNEL_OK")
</pallas_src>

<mosaic_0001>
module attributes {stable_mosaic.version = 11 : i64} {
  func.func @_hardsigmoid_kernel(%arg0: memref<1x4xf32, #tpu.memory_space<vmem>>, %arg1: memref<1x4xf32, #tpu.memory_space<vmem>>) attributes {dimension_semantics = [], scalar_prefetch = 0 : i64, scratch_operands = 0 : i64, tpu.core_type = #tpu.core_type<tc>} {
    %c0 = arith.constant 0 : index
    %c0_0 = arith.constant 0 : index
    %0 = vector.load %arg0[%c0, %c0_0] : memref<1x4xf32, #tpu.memory_space<vmem>>, vector<1x4xf32>
    %cst = arith.constant 3.000000e+00 : f32
    %1 = vector.broadcast %cst : f32 to vector<1x4xf32>
    %2 = arith.addf %0, %1 : vector<1x4xf32>
    %c0_i32 = arith.constant 0 : i32
    %cst_1 = arith.constant 6.000000e+00 : f32
    %3 = arith.sitofp %c0_i32 : i32 to f32
    %4 = vector.broadcast %3 : f32 to vector<1x4xf32>
    %5 = arith.maximumf %4, %2 : vector<1x4xf32>
    %6 = vector.broadcast %cst_1 : f32 to vector<1x4xf32>
    %7 = arith.minimumf %6, %5 : vector<1x4xf32>
    %cst_2 = arith.constant 0.166666672 : f32
    %8 = vector.broadcast %cst_2 : f32 to vector<1x4xf32>
    %9 = arith.mulf %7, %8 : vector<1x4xf32>
    %c0_3 = arith.constant 0 : index
    %c0_4 = arith.constant 0 : index
    %10 = vector.load %arg1[%c0_3, %c0_4] : memref<1x4xf32, #tpu.memory_space<vmem>>, vector<1x4xf32>
    tpu.vector_store %arg1[%c0_3, %c0_4], %9 {strides = array<i32>} : memref<1x4xf32, #tpu.memory_space<vmem>>, vector<1x4xf32>,
    return
  }
}

</mosaic_0001>

<llo_original>
// kernel: tpu_custom_call.1
$region0: #{tpu_custom_call.1}
  #allocation0 [shape = 'u32[]', space=smem, size = 0x4, offset = 0x4, fixed_abs, tag = 'smem constant byte address 0x4 - core index']
  #allocation1 [shape = 'u32[144,128]{1,0:T(1,128)}', space=vmem, size = 0x12000, scoped, tag = 'internal scratch']
  %s0 = inlined_call_operand.hbm [shape: f32[1,4], index: 0, kind: input, shape index: {}]
  %s1 = inlined_call_operand.hbm [shape: f32[1,4], index: 1, kind: output, shape index: {}]
  %s2 = sld [smem:[#allocation0]]
  $region18: #{tpu_custom_call.1} parent=0
    _
  %s4 = ssub.s32 1, %s2
  %s5 = scalar_select 0, %s4, %s2
  $region1: #{tpu_custom_call.1} parent=0
    #allocation2 [shape = 'u8[512]{0}', space=vmem, size = 0x400, scoped, tag = 'input window, operand 0, single buffered']
    #allocation3 [shape = 's32[1]{0}', space=sflag, size = 0x4, scoped, tag = 'scoped memory for tpu_custom_call.1']
    #allocation4 [shape = 's32[1]{0}', space=sflag, size = 0x4, scoped, tag = 'scoped memory for tpu_custom_call.1']
    #allocation5 [shape = 'u8[512]{0}', space=vmem, size = 0x400, scoped, tag = 'output window, operand 0, single buffered']
    %6 = vsyncpa [#allocation3], 0
    %7 = vsyncpa [#allocation4], 0
    // Predicated region
    $region2: #{tpu_custom_call.1} parent=1 // pred_check
      _
    $region3: #{tpu_custom_call.1} parent=1 // pred_check_branch
      %9 = sbr.rel (0) target = $region5
    $region4: #{tpu_custom_call.1} parent=1 // pred_region
      %s11 = ssub.s32 16, 16
      %12 = vsyncadd [#allocation3], %s11
      %s14 = sshll.u32 [#allocation2], 4
      %s15 = int_to_ptr.vmem [resolvable:$true] %s14
      %17 = dma.hbm_to_vmem [thread:$0]  %s0, 16, %s15, [#allocation3]
    $region5: #{tpu_custom_call.1} parent=1 // pred_fallthru
      _
    // Predicated region
    $region6: #{tpu_custom_call.1} parent=1 // pred_check
      _
    $region7: #{tpu_custom_call.1} parent=1 // pred_check_branch
      %19 = sbr.rel (0) target = $region9
    $region8: #{tpu_custom_call.1} parent=1 // pred_region
      %20 = dma.done [#allocation3], 16
    $region9: #{tpu_custom_call.1} parent=1 // pred_fallthru
      _
    %v21 = vld [vmem:[#allocation2] sm:$0x1]
    %v22 = vadd.f32 %v21, 3.0
    %v23 = vmax.f32 %v22, 0.0
    %v24 = vmin.f32 %v23, 6.0
    %v25 = vmul.f32 %v24, 0.16666667
    %vm26 = vcmask 24576
    %27 = vst.msk [vmem:[#allocation5] sm:$0x1] %vm26, %v25
    // Predicated region
    $region10: #{tpu_custom_call.1} parent=1 // pred_check
      _
    $region11: #{tpu_custom_call.1} parent=1 // pred_check_branch
      %29 = sbr.rel (0) target = $region13
    $region12: #{tpu_custom_call.1} parent=1 // pred_region
      %s31 = ssub.s32 16, 16
      %32 = vsyncadd [#allocation4], %s31
      %s34 = sshll.u32 [#allocation5], 4
      %s35 = int_to_ptr.vmem [resolvable:$true] %s34
      %37 = dma.vmem_to_hbm [thread:$0]  %s35, 16, %s1, [#allocation4]
    $region13: #{tpu_custom_call.1} parent=1 // pred_fallthru
      _
    // Predicated region
    $region14: #{tpu_custom_call.1} parent=1 // pred_check
      _
    $region15: #{tpu_custom_call.1} parent=1 // pred_check_branch
      %39 = sbr.rel (0) target = $region17
    $region16: #{tpu_custom_call.1} parent=1 // pred_region
      %40 = dma.done [#allocation4], 16
    $region17: #{tpu_custom_call.1} parent=1 // pred_fallthru
      _
    %41 = vsyncpa [#allocation3], 1
    %42 = vsyncpa [#allocation4], 1

</llo_original>
